<compile_context>
chip_gen: v7x
topology: tpu7x:2x2x1
jax: 0.10.0
libtpu: 0.0.40
codegen_flags: <defaults>
</compile_context>

<pallas_src>
import jax
import jax.numpy as jnp
from jax.experimental import pallas as pl
from jax.experimental.pallas import tpu as pltpu


def _swish_kernel(x_ref, o_ref):
    x = x_ref[...]
    xf = x.astype(jnp.float32)
    # sigmoid(x) == 0.5 * (tanh(0.5*x) + 1): a single EUP transcendental per
    # element; EUP/VPU never saturate, kernel stays HBM-bound.
    sig = 0.5 * (jnp.tanh(0.5 * xf) + 1.0)
    o_ref[...] = (xf * sig).astype(o_ref.dtype)


def _target_tile_bytes():
    """Generation-dependent tile budget (in f32-compute bytes).

    v7x: 4 MiB tiles (16 MiB double-buffered in+out footprint < 32 MiB scoped
         VMEM default); at 3.2 TB/s a 2 MiB tile leaves ~20-25% per-step
         pipeline overhead exposed.
    v5e: must stay at 2 MiB (16 MiB scoped-VMEM default).
    v6e: 2 MiB is already at the measured 85-86% roofline plateau; larger
         tiles buy <=2%, so 2 MiB is the shared safe default.
    """
    four_mib, two_mib = 4 * 1024 * 1024, 2 * 1024 * 1024
    try:
        if "v7" in jax.devices()[0].device_kind.lower():
            return four_mib
    except Exception:
        pass
    return two_mib


def swish(x, *, target_tile_bytes=None, donate_input=False):
    """Elementwise x * sigmoid(x) via a Pallas TPU kernel (any shape/dtype)."""
    orig_shape = x.shape
    dtype = x.dtype
    n = x.size
    if n == 0:
        return x

    if target_tile_bytes is None:
        target_tile_bytes = _target_tile_bytes()

    itemsize = jnp.dtype(dtype).itemsize
    # Budget tiles by f32-compute bytes so the in-kernel f32 intermediates of
    # sub-32-bit inputs don't overshoot VMEM.
    budget_itemsize = max(itemsize, 4)
    # Packed-sublane multiple: 8 (f32), 16 (bf16/f16), 32 (int8/fp8).
    sub_mult = {4: 8, 2: 16, 1: 32}.get(itemsize, 8)

    compiler_params = pltpu.CompilerParams(dimension_semantics=("parallel",))
    # TODO(synk): on v7x, confirm in xprof that the "parallel" grid axis shards
    # across both TensorCores; if not, switch this axis to pltpu.CORE_PARALLEL.

    io_aliases = {0: 0} if donate_input else {}

    flat = x.reshape(-1)

    # Fast path: widest lane-dense column width that divides n exactly.
    C = next((c for c in (4096, 2048, 1024, 512, 256, 128) if n % c == 0), None)

    if C is not None:
        rows = n // C
        desired_rows = max(sub_mult, target_tile_bytes // (C * budget_itemsize))
        if rows <= desired_rows:
            block_rows = rows  # full row extent (always a legal block)
        else:
            block_rows = max(sub_mult, (desired_rows // sub_mult) * sub_mult)
        grid = (pl.cdiv(rows, block_rows),)
        block = (block_rows, C)
        index_map = lambda i: (i, 0)
        x2d = flat.reshape(rows, C)
        out_shape2d = (rows, C)
    else:
        # Ragged tail (n % 128 != 0): view as (1, n) and tile along lanes.
        # Pallas masks the partial last block -> exactly 1 HBM read + 1 write,
        # no jnp.pad and no trailing slice.
        cols = n
        # A (1, W) block occupies ~8x its raw bytes in VMEM (sublane padding),
        # so divide the tile budget by 8.
        max_cols = max(
            128, ((target_tile_bytes // 8) // budget_itemsize // 128) * 128
        )
        block_cols = cols if cols <= max_cols else max_cols
        grid = (pl.cdiv(cols, block_cols),)
        block = (1, block_cols)
        index_map = lambda i: (0, i)
        x2d = flat.reshape(1, cols)
        out_shape2d = (1, cols)

    out = pl.pallas_call(
        _swish_kernel,
        out_shape=jax.ShapeDtypeStruct(out_shape2d, dtype),
        grid_spec=pltpu.PrefetchScalarGridSpec(
            num_scalar_prefetch=0,
            grid=grid,
            in_specs=[pl.BlockSpec(block, index_map)],
            out_specs=pl.BlockSpec(block, index_map),
        ),
        compiler_params=compiler_params,
        input_output_aliases=io_aliases,
    )(x2d)

    return out.reshape(orig_shape)


if __name__ == "__main__":
    key = jax.random.PRNGKey(0)
    # NCHW input, small shape consistent with typical conv activations.
    x = jax.random.normal(key, (2, 4, 16, 16), dtype=jnp.float32)

    y = swish(x)
    jax.block_until_ready(y)

    y_ref = x * jax.nn.sigmoid(x)
    assert y.shape == x.shape and y.dtype == x.dtype
    assert jnp.max(jnp.abs(y - y_ref)) < 1e-5

    # Ragged element count (n % 128 != 0) exercises the masked-tail path
    # (no pad / no slice, single pallas_call).
    x2 = jax.random.normal(jax.random.PRNGKey(1), (3, 5, 7), dtype=jnp.float32)
    y2 = swish(x2)
    jax.block_until_ready(y2)
    y2_ref = x2 * jax.nn.sigmoid(x2)
    assert y2.shape == x2.shape and y2.dtype == x2.dtype
    assert jnp.max(jnp.abs(y2 - y2_ref)) < 1e-5

    print("KERNEL_OK")
</pallas_src>

<mosaic_0001>
module attributes {stable_mosaic.version = 11 : i64} {
  func.func @_swish_kernel(%arg0: i32, %arg1: memref<1x2048xf32, #tpu.memory_space<vmem>>, %arg2: memref<1x2048xf32, #tpu.memory_space<vmem>>) attributes {dimension_semantics = [#tpu.dimension_semantics<parallel>], iteration_bounds = array<i64: 1>, scalar_prefetch = 0 : i64, scratch_operands = 0 : i64, tpu.core_type = #tpu.core_type<tc>, window_params = [{transform_indices = @transform_0, window_bounds = array<i64: 1, 2048>}, {transform_indices = @transform_1, window_bounds = array<i64: 1, 2048>}]} {
    %c0 = arith.constant 0 : index
    %c0_0 = arith.constant 0 : index
    %0 = vector.load %arg1[%c0, %c0_0] : memref<1x2048xf32, #tpu.memory_space<vmem>>, vector<1x2048xf32>
    %cst = arith.constant 5.000000e-01 : f32
    %1 = vector.broadcast %cst : f32 to vector<1x2048xf32>
    %2 = arith.mulf %1, %0 : vector<1x2048xf32>
    %3 = math.tanh %2 : vector<1x2048xf32>
    %cst_1 = arith.constant 1.000000e+00 : f32
    %4 = vector.broadcast %cst_1 : f32 to vector<1x2048xf32>
    %5 = arith.addf %3, %4 : vector<1x2048xf32>
    %cst_2 = arith.constant 5.000000e-01 : f32
    %6 = vector.broadcast %cst_2 : f32 to vector<1x2048xf32>
    %7 = arith.mulf %6, %5 : vector<1x2048xf32>
    %8 = arith.mulf %0, %7 : vector<1x2048xf32>
    %c0_3 = arith.constant 0 : index
    %c0_4 = arith.constant 0 : index
    %9 = vector.load %arg2[%c0_3, %c0_4] : memref<1x2048xf32, #tpu.memory_space<vmem>>, vector<1x2048xf32>
    tpu.vector_store %arg2[%c0_3, %c0_4], %8 {strides = array<i32>} : memref<1x2048xf32, #tpu.memory_space<vmem>>, vector<1x2048xf32>,
    return
  }
  func.func @transform_0(%arg0: i32) -> (i32, i32) {
    %c0_i32 = arith.constant 0 : i32
    %c0_i32_0 = arith.constant 0 : i32
    return %arg0, %c0_i32 : i32, i32
  }
  func.func @transform_1(%arg0: i32) -> (i32, i32) {
    %c0_i32 = arith.constant 0 : i32
    %c0_i32_0 = arith.constant 0 : i32
    return %arg0, %c0_i32 : i32, i32
  }
}

</mosaic_0001>

<llo_original>
// kernel: tpu_custom_call.1
$region0: #{tpu_custom_call.1}
  #allocation0 [shape = 'u32[]', space=smem, size = 0x4, offset = 0x4, fixed_abs, tag = 'smem constant byte address 0x4 - core index']
  #allocation1 [shape = 'u32[144,128]{1,0:T(1,128)}', space=vmem, size = 0x12000, scoped, tag = 'internal scratch']
  %s0 = inlined_call_operand.hbm [shape: f32[1,2048], index: 0, kind: input, shape index: {}]
  %s1 = inlined_call_operand.hbm [shape: f32[1,2048], index: 1, kind: output, shape index: {}]
  %s2 = sld [smem:[#allocation0]]
  $region18: #{tpu_custom_call.1} parent=0
    _
  %s4 = ssub.s32 1, %s2
  %s5 = scalar_select 0, %s4, %s2
  $region1: #{tpu_custom_call.1} parent=0
    #allocation2 [shape = 'u8[8192]{0}', space=vmem, size = 0x2000, scoped, tag = 'input window, operand 0, single buffered']
    #allocation3 [shape = 's32[1]{0}', space=sflag, size = 0x4, scoped, tag = 'scoped memory for tpu_custom_call.1']
    #allocation4 [shape = 's32[1]{0}', space=sflag, size = 0x4, scoped, tag = 'scoped memory for tpu_custom_call.1']
    #allocation5 [shape = 'u8[8192]{0}', space=vmem, size = 0x2000, scoped, tag = 'output window, operand 0, single buffered']
    %6 = vsyncpa [#allocation3], 0
    %7 = vsyncpa [#allocation4], 0
    // Predicated region
    $region2: #{tpu_custom_call.1} parent=1 // pred_check
      _
    $region3: #{tpu_custom_call.1} parent=1 // pred_check_branch
      %9 = sbr.rel (0) target = $region5
    $region4: #{tpu_custom_call.1} parent=1 // pred_region
      %s11 = ssub.s32 256, 256
      %12 = vsyncadd [#allocation3], %s11
      %s14 = sshll.u32 [#allocation2], 4
      %s15 = int_to_ptr.vmem [resolvable:$true] %s14
      %17 = dma.hbm_to_vmem [thread:$0]  %s0, 256, %s15, [#allocation3]
    $region5: #{tpu_custom_call.1} parent=1 // pred_fallthru
      _
    // Predicated region
    $region6: #{tpu_custom_call.1} parent=1 // pred_check
      _
    $region7: #{tpu_custom_call.1} parent=1 // pred_check_branch
      %19 = sbr.rel (0) target = $region9
    $region8: #{tpu_custom_call.1} parent=1 // pred_region
      %20 = dma.done [#allocation3], 256
    $region9: #{tpu_custom_call.1} parent=1 // pred_fallthru
      _
    %v21 = vld [vmem:[#allocation2] sm:$0xff]
    %v22 = vld [vmem:[#allocation2 + $0x8] sm:$0xff]
    %v23 = vmul.f32 %v21, 0.5
    %v24 = vmul.f32 %v22, 0.5
    %v25 = vtanh.pop %v23
    %v26 = vtanh.pop %v24
    %v27 = vadd.f32 %v25, 1.0
    %v28 = vadd.f32 %v26, 1.0
    %v29 = vmul.f32 %v27, 0.5
    %v30 = vmul.f32 %v28, 0.5
    %v31 = vmul.f32 %v21, %v29
    %v32 = vmul.f32 %v22, %v30
    %33 = vst [vmem:[#allocation5] sm:$0xff] %v31
    %34 = vst [vmem:[#allocation5 + $0x8] sm:$0xff] %v32
    // Predicated region
    $region10: #{tpu_custom_call.1} parent=1 // pred_check
      _
    $region11: #{tpu_custom_call.1} parent=1 // pred_check_branch
      %36 = sbr.rel (0) target = $region13
    $region12: #{tpu_custom_call.1} parent=1 // pred_region
      %s38 = ssub.s32 256, 256
      %39 = vsyncadd [#allocation4], %s38
      %s41 = sshll.u32 [#allocation5], 4
      %s42 = int_to_ptr.vmem [resolvable:$true] %s41
      %44 = dma.vmem_to_hbm [thread:$0]  %s42, 256, %s1, [#allocation4]
    $region13: #{tpu_custom_call.1} parent=1 // pred_fallthru
      _
    // Predicated region
    $region14: #{tpu_custom_call.1} parent=1 // pred_check
      _
    $region15: #{tpu_custom_call.1} parent=1 // pred_check_branch
      %46 = sbr.rel (0) target = $region17
    $region16: #{tpu_custom_call.1} parent=1 // pred_region
      %47 = dma.done [#allocation4], 256
    $region17: #{tpu_custom_call.1} parent=1 // pred_fallthru
      _
    %48 = vsyncpa [#allocation3], 1
    %49 = vsyncpa [#allocation4], 1

</llo_original>
